<compile_context>
chip_gen: v7x
topology: tpu7x:2x2x1
jax: 0.10.0
libtpu: 0.0.40
codegen_flags: <defaults>
</compile_context>

<pallas_src>
import jax
import jax.numpy as jnp
from jax.experimental import pallas as pl
from jax.experimental.pallas import tpu as pltpu


def _make_stp_mlp_kernel(use_mxu):
    def kernel(x_ref, f_ref, w_ref, lam_ref, gam_ref, b_ref, h_ref, f_out_ref):
        # One grid step == one batch tile of TB samples.
        x = x_ref[...].astype(jnp.float32)          # (TB, I)
        f = f_ref[...].astype(jnp.float32)          # (TB, H, I)
        lam = lam_ref[...].astype(jnp.float32)      # (H, I)
        gam = gam_ref[...].astype(jnp.float32)      # (H, I)
        bias = b_ref[...]                           # (1, H) f32
        w = w_ref[...].astype(jnp.float32)          # (I, H) if use_mxu else (H, I)

        if use_mxu:
            # Dense part on the MXU (W passed pre-transposed), plastic
            # correction on the VPU + XLU reduce.
            pre = jnp.dot(x, w, preferred_element_type=jnp.float32)      # (TB, H)
            pre = pre + jnp.sum(f * x[:, None, :], axis=-1)              # (TB, H)
        else:
            # Small layers: MXU would be <2% utilized; fold W into the
            # broadcast-multiply + cross-lane reduce.
            pre = jnp.sum((w + f) * x[:, None, :], axis=-1)              # (TB, H)

        h = jnp.tanh(pre + bias)                                         # (TB, H)

        # Hebbian state update: F' = lam*F + gamma * h x^T  (pure VPU elementwise)
        f_new = lam * f + gam * (h[:, :, None] * x[:, None, :])          # (TB, H, I)

        h_ref[...] = h.astype(h_ref.dtype)
        f_out_ref[...] = f_new.astype(f_out_ref.dtype)

    return kernel


def stp_mlp_forward(x, f_state, w, lam, gam, bias,
                    *, vmem_limit_bytes=32 * 1024 * 1024):
    """x: [B, I], f_state: [B, H, I] -> (h [B, H], f_new [B, H, I]).

    f_state / lam / gam may be bf16 (state kept in that dtype, compute in f32).
    """
    B, I = x.shape
    H = w.shape[0]
    state_dtype = f_state.dtype
    h_dtype = x.dtype

    # ---- batch tile: target ~1 MiB of F per grid step, capped by a VMEM budget
    # that is safe on v7x (64 MiB physical). Double-buffered F-in + F_new-out
    # costs ~4 * TB * H * I * itemsize bytes.
    f_bytes_per_sample = H * I * f_state.dtype.itemsize
    f_vmem_budget = 16 * 1024 * 1024
    tb_vmem = max(1, f_vmem_budget // (4 * f_bytes_per_sample))
    tb_target = max(1, (1 * 1024 * 1024) // f_bytes_per_sample)
    tb = int(min(B, tb_vmem, tb_target))
    if 8 < tb < B:
        tb -= tb % 8                      # keep the second-minor (batch) dim 8-aligned

    num_blocks = pl.cdiv(B, tb)
    b_pad = num_blocks * tb
    if b_pad != B:
        # Zero-pad the batch; padded rows produce tanh(bias) / zero F rows that are
        # sliced off below, so no stale data leaks into the real outputs.
        x_in = jnp.pad(x, ((0, b_pad - B), (0, 0)))
        f_in = jnp.pad(f_state, ((0, b_pad - B), (0, 0), (0, 0)))
    else:
        x_in, f_in = x, f_state

    # MXU for the shared dense part only when the matmul is big enough to matter.
    use_mxu = (H >= 128) and (I >= 128)
    if use_mxu:
        w_arg = jnp.transpose(w)          # (I, H) so the kernel does x @ W^T directly
        w_block = (I, H)
    else:
        w_arg = w                         # (H, I)
        w_block = (H, I)

    bias2d = bias.reshape(1, H).astype(jnp.float32)

    grid_spec = pltpu.PrefetchScalarGridSpec(
        num_scalar_prefetch=0,
        grid=(num_blocks,),
        in_specs=[
            pl.BlockSpec((tb, I), lambda b: (b, 0)),         # x
            pl.BlockSpec((tb, H, I), lambda b: (b, 0, 0)),   # F
            pl.BlockSpec(w_block, lambda b: (0, 0)),         # W (resident)
            pl.BlockSpec((H, I), lambda b: (0, 0)),          # lam (resident)
            pl.BlockSpec((H, I), lambda b: (0, 0)),          # gamma (resident)
            pl.BlockSpec((1, H), lambda b: (0, 0)),          # bias (resident)
        ],
        out_specs=[
            pl.BlockSpec((tb, H), lambda b: (b, 0)),         # h
            pl.BlockSpec((tb, H, I), lambda b: (b, 0, 0)),   # F_new
        ],
    )

    h, f_new = pl.pallas_call(
        _make_stp_mlp_kernel(use_mxu),
        out_shape=(
            jax.ShapeDtypeStruct((b_pad, H), h_dtype),
            jax.ShapeDtypeStruct((b_pad, H, I), state_dtype),
        ),
        grid_spec=grid_spec,
        compiler_params=pltpu.CompilerParams(
            dimension_semantics=("parallel",),
            vmem_limit_bytes=vmem_limit_bytes,
        ),
    )(x_in, f_in, w_arg, lam, gam, bias2d)

    if b_pad != B:
        h = h[:B]
        f_new = f_new[:B]
    return h, f_new


def stp_mlp_reference(x, f_state, w, lam, gam, bias):
    g = w[None, :, :] + f_state
    pre = jnp.einsum("bhi,bi->bh", g, x) + bias[None, :]
    h = jnp.tanh(pre)
    f_new = lam[None] * f_state + gam[None] * (h[:, :, None] * x[:, None, :])
    return h, f_new


if __name__ == "__main__":
    B, I, H = 2, 16, 32  # batch, input_size, hidden_size

    key = jax.random.PRNGKey(0)
    k_x, k_f, k_w, k_lam, k_gam, k_b = jax.random.split(key, 6)

    x = jax.random.normal(k_x, (B, I), dtype=jnp.float32)
    f_state = 0.1 * jax.random.normal(k_f, (B, H, I), dtype=jnp.float32)

    # Deterministic synthetic parameters (shapes from STPNF(in=I, out=H, bias=True)).
    w = 0.3 * jax.random.normal(k_w, (H, I), dtype=jnp.float32)
    lam = jax.nn.sigmoid(jax.random.normal(k_lam, (H, I), dtype=jnp.float32))  # decay (0,1)
    gam = 0.1 * jax.random.normal(k_gam, (H, I), dtype=jnp.float32)            # plasticity
    bias = 0.1 * jax.random.normal(k_b, (H,), dtype=jnp.float32)

    # --- f32 state path (exact vs reference) ---
    h, f_new = stp_mlp_forward(x, f_state, w, lam, gam, bias)
    jax.block_until_ready((h, f_new))

    h_ref, f_ref = stp_mlp_reference(x, f_state, w, lam, gam, bias)
    assert jnp.allclose(h, h_ref, atol=1e-5, rtol=1e-5)
    assert jnp.allclose(f_new, f_ref, atol=1e-5, rtol=1e-5)

    # --- bf16 plastic-state path (halves HBM traffic of the memory-bound F state) ---
    f_bf = f_state.astype(jnp.bfloat16)
    lam_bf = lam.astype(jnp.bfloat16)
    gam_bf = gam.astype(jnp.bfloat16)
    h2, f_new2 = stp_mlp_forward(x, f_bf, w, lam_bf, gam_bf, bias)
    jax.block_until_ready((h2, f_new2))

    h_ref2, f_ref2 = stp_mlp_reference(
        x, f_bf.astype(jnp.float32), w,
        lam_bf.astype(jnp.float32), gam_bf.astype(jnp.float32), bias)
    assert jnp.allclose(h2, h_ref2, atol=2e-2, rtol=2e-2)
    assert jnp.allclose(f_new2.astype(jnp.float32), f_ref2, atol=2e-2, rtol=2e-2)

    print("KERNEL_OK")
</pallas_src>

<mosaic_0001>
module attributes {stable_mosaic.version = 11 : i64} {
  func.func @kernel(%arg0: i32, %arg1: memref<2x16xf32, #tpu.memory_space<vmem>>, %arg2: memref<2x32x16xf32, #tpu.memory_space<vmem>>, %arg3: memref<32x16xf32, #tpu.memory_space<vmem>>, %arg4: memref<32x16xf32, #tpu.memory_space<vmem>>, %arg5: memref<32x16xf32, #tpu.memory_space<vmem>>, %arg6: memref<1x32xf32, #tpu.memory_space<vmem>>, %arg7: memref<2x32xf32, #tpu.memory_space<vmem>>, %arg8: memref<2x32x16xf32, #tpu.memory_space<vmem>>) attributes {dimension_semantics = [#tpu.dimension_semantics<parallel>], iteration_bounds = array<i64: 1>, scalar_prefetch = 0 : i64, scratch_operands = 0 : i64, tpu.core_type = #tpu.core_type<tc>, window_params = [{transform_indices = @transform_0, window_bounds = array<i64: 2, 16>}, {transform_indices = @transform_1, window_bounds = array<i64: 2, 32, 16>}, {pipeline_mode = #tpu.pipeline_mode<synchronous>, transform_indices = @transform_2, window_bounds = array<i64: 32, 16>}, {pipeline_mode = #tpu.pipeline_mode<synchronous>, transform_indices = @transform_3, window_bounds = array<i64: 32, 16>}, {pipeline_mode = #tpu.pipeline_mode<synchronous>, transform_indices = @transform_4, window_bounds = array<i64: 32, 16>}, {pipeline_mode = #tpu.pipeline_mode<synchronous>, transform_indices = @transform_5, window_bounds = array<i64: 1, 32>}, {transform_indices = @transform_6, window_bounds = array<i64: 2, 32>}, {transform_indices = @transform_7, window_bounds = array<i64: 2, 32, 16>}]} {
    %c0 = arith.constant 0 : index
    %c0_0 = arith.constant 0 : index
    %0 = vector.load %arg1[%c0, %c0_0] : memref<2x16xf32, #tpu.memory_space<vmem>>, vector<2x16xf32>
    %c0_1 = arith.constant 0 : index
    %c0_2 = arith.constant 0 : index
    %c0_3 = arith.constant 0 : index
    %1 = vector.load %arg2[%c0_1, %c0_2, %c0_3] : memref<2x32x16xf32, #tpu.memory_space<vmem>>, vector<2x32x16xf32>
    %c0_4 = arith.constant 0 : index
    %c0_5 = arith.constant 0 : index
    %2 = vector.load %arg4[%c0_4, %c0_5] : memref<32x16xf32, #tpu.memory_space<vmem>>, vector<32x16xf32>
    %c0_6 = arith.constant 0 : index
    %c0_7 = arith.constant 0 : index
    %3 = vector.load %arg5[%c0_6, %c0_7] : memref<32x16xf32, #tpu.memory_space<vmem>>, vector<32x16xf32>
    %c0_8 = arith.constant 0 : index
    %c0_9 = arith.constant 0 : index
    %4 = vector.load %arg6[%c0_8, %c0_9] : memref<1x32xf32, #tpu.memory_space<vmem>>, vector<1x32xf32>
    %c0_10 = arith.constant 0 : index
    %c0_11 = arith.constant 0 : index
    %5 = vector.load %arg3[%c0_10, %c0_11] : memref<32x16xf32, #tpu.memory_space<vmem>>, vector<32x16xf32>
    %6 = vector.shape_cast %5 : vector<32x16xf32> to vector<1x32x16xf32>
    %7 = vector.broadcast %6 : vector<1x32x16xf32> to vector<2x32x16xf32>
    %8 = arith.addf %7, %1 : vector<2x32x16xf32>
    %9 = vector.shape_cast %0 : vector<2x16xf32> to vector<2x1x16xf32>
    %10 = vector.broadcast %9 : vector<2x1x16xf32> to vector<2x32x16xf32>
    %11 = arith.mulf %8, %10 : vector<2x32x16xf32>
    %cst = arith.constant dense<0.000000e+00> : vector<2x32xf32>
    %12 = vector.multi_reduction <add>, %11, %cst [2] : vector<2x32x16xf32> to vector<2x32xf32>
    %13 = vector.broadcast %4 : vector<1x32xf32> to vector<2x32xf32>
    %14 = arith.addf %12, %13 : vector<2x32xf32>
    %15 = math.tanh %14 : vector<2x32xf32>
    %16 = vector.shape_cast %2 : vector<32x16xf32> to vector<1x32x16xf32>
    %17 = vector.broadcast %16 : vector<1x32x16xf32> to vector<2x32x16xf32>
    %18 = arith.mulf %17, %1 : vector<2x32x16xf32>
    %19 = vector.shape_cast %15 : vector<2x32xf32> to vector<2x32x1xf32>
    %20 = vector.shape_cast %0 : vector<2x16xf32> to vector<2x1x16xf32>
    %21 = vector.broadcast %19 : vector<2x32x1xf32> to vector<2x32x16xf32>
    %22 = vector.broadcast %20 : vector<2x1x16xf32> to vector<2x32x16xf32>
    %23 = arith.mulf %21, %22 : vector<2x32x16xf32>
    %24 = vector.shape_cast %3 : vector<32x16xf32> to vector<1x32x16xf32>
    %25 = vector.broadcast %24 : vector<1x32x16xf32> to vector<2x32x16xf32>
    %26 = arith.mulf %25, %23 : vector<2x32x16xf32>
    %27 = arith.addf %18, %26 : vector<2x32x16xf32>
    %c0_12 = arith.constant 0 : index
    %c0_13 = arith.constant 0 : index
    %28 = vector.load %arg7[%c0_12, %c0_13] : memref<2x32xf32, #tpu.memory_space<vmem>>, vector<2x32xf32>
    tpu.vector_store %arg7[%c0_12, %c0_13], %15 {strides = array<i32>} : memref<2x32xf32, #tpu.memory_space<vmem>>, vector<2x32xf32>,
    %c0_14 = arith.constant 0 : index
    %c0_15 = arith.constant 0 : index
    %c0_16 = arith.constant 0 : index
    %29 = vector.load %arg8[%c0_14, %c0_15, %c0_16] : memref<2x32x16xf32, #tpu.memory_space<vmem>>, vector<2x32x16xf32>
    tpu.vector_store %arg8[%c0_14, %c0_15, %c0_16], %27 {strides = array<i32>} : memref<2x32x16xf32, #tpu.memory_space<vmem>>, vector<2x32x16xf32>,
    return
  }
  func.func @transform_0(%arg0: i32) -> (i32, i32) {
    %c0_i32 = arith.constant 0 : i32
    %c0_i32_0 = arith.constant 0 : i32
    return %arg0, %c0_i32 : i32, i32
  }
  func.func @transform_1(%arg0: i32) -> (i32, i32, i32) {
    %c0_i32 = arith.constant 0 : i32
    %c0_i32_0 = arith.constant 0 : i32
    %c0_i32_1 = arith.constant 0 : i32
    return %arg0, %c0_i32, %c0_i32_0 : i32, i32, i32
  }
  func.func @transform_2(%arg0: i32) -> (i32, i32) {
    %c0_i32 = arith.constant 0 : i32
    %c0_i32_0 = arith.constant 0 : i32
    %c0_i32_1 = arith.constant 0 : i32
    return %c0_i32, %c0_i32_0 : i32, i32
  }
  func.func @transform_3(%arg0: i32) -> (i32, i32) {
    %c0_i32 = arith.constant 0 : i32
    %c0_i32_0 = arith.constant 0 : i32
    %c0_i32_1 = arith.constant 0 : i32
    return %c0_i32, %c0_i32_0 : i32, i32
  }
  func.func @transform_4(%arg0: i32) -> (i32, i32) {
    %c0_i32 = arith.constant 0 : i32
    %c0_i32_0 = arith.constant 0 : i32
    %c0_i32_1 = arith.constant 0 : i32
    return %c0_i32, %c0_i32_0 : i32, i32
  }
  func.func @transform_5(%arg0: i32) -> (i32, i32) {
    %c0_i32 = arith.constant 0 : i32
    %c0_i32_0 = arith.constant 0 : i32
    %c0_i32_1 = arith.constant 0 : i32
    return %c0_i32, %c0_i32_0 : i32, i32
  }
  func.func @transform_6(%arg0: i32) -> (i32, i32) {
    %c0_i32 = arith.constant 0 : i32
    %c0_i32_0 = arith.constant 0 : i32
    return %arg0, %c0_i32 : i32, i32
  }
  func.func @transform_7(%arg0: i32) -> (i32, i32, i32) {
    %c0_i32 = arith.constant 0 : i32
    %c0_i32_0 = arith.constant 0 : i32
    %c0_i32_1 = arith.constant 0 : i32
    return %arg0, %c0_i32, %c0_i32_0 : i32, i32, i32
  }
}

</mosaic_0001>

<llo_original>
// kernel: tpu_custom_call.1
$region0: #{tpu_custom_call.1}
  #allocation0 [shape = 'u32[]', space=smem, size = 0x4, offset = 0x4, fixed_abs, tag = 'smem constant byte address 0x4 - core index']
  #allocation1 [shape = 'u32[144,128]{1,0:T(1,128)}', space=vmem, size = 0x12000, scoped, tag = 'internal scratch']
  %s0 = inlined_call_operand.vmem [shape: f32[2,16], index: 0, kind: input, shape index: {}]
  %s1 = inlined_call_operand.vmem [shape: f32[2,32,16], index: 1, kind: input, shape index: {}]
  %s2 = inlined_call_operand.vmem [shape: f32[32,16], index: 2, kind: input, shape index: {}]
  %s3 = inlined_call_operand.vmem [shape: f32[32,16], index: 3, kind: input, shape index: {}]
  %s4 = inlined_call_operand.vmem [shape: f32[32,16], index: 4, kind: input, shape index: {}]
  %s5 = inlined_call_operand.vmem [shape: f32[1,32], index: 5, kind: input, shape index: {}]
  %s6 = inlined_call_operand.hbm [shape: f32[2,32], index: 6, kind: output, shape index: {0}]
  %s7 = inlined_call_operand.vmem [shape: f32[2,32,16], index: 7, kind: output, shape index: {1}]
  %8 = xla_tuple %s6, %s7
  %s9 = sld [smem:[#allocation0]]
  $region42: #{tpu_custom_call.1} parent=0
    _
  %s11 = ssub.s32 1, %s9
  %s12 = scalar_select 0, %s11, %s9
  $region1: #{tpu_custom_call.1} parent=0
    #allocation2 [shape = 'u8[1024]{0}', space=vmem, size = 0x400, scoped, tag = 'output window, operand 0, single buffered']
    #allocation3 [shape = 's32[1]{0}', space=sflag, size = 0x4, scoped, tag = 'scoped memory for tpu_custom_call.1']
    %13 = vsyncpa [#allocation3], 0
    // Predicated region
    $region2: #{tpu_custom_call.1} parent=1 // pred_check
      _
    $region3: #{tpu_custom_call.1} parent=1 // pred_check_branch
      %15 = sbr.rel (0) target = $region5
    $region4: #{tpu_custom_call.1} parent=1 // pred_region
      _
    $region5: #{tpu_custom_call.1} parent=1 // pred_fallthru
      _
    // Predicated region
    $region6: #{tpu_custom_call.1} parent=1 // pred_check
      _
    $region7: #{tpu_custom_call.1} parent=1 // pred_check_branch
      %17 = sbr.rel (0) target = $region9
    $region8: #{tpu_custom_call.1} parent=1 // pred_region
      _
    $region9: #{tpu_custom_call.1} parent=1 // pred_fallthru
      _
    // Predicated region
    $region10: #{tpu_custom_call.1} parent=1 // pred_check
      _
    $region11: #{tpu_custom_call.1} parent=1 // pred_check_branch
      %19 = sbr.rel (0) target = $region13
    $region12: #{tpu_custom_call.1} parent=1 // pred_region
      _
    $region13: #{tpu_custom_call.1} parent=1 // pred_fallthru
      _
    // Predicated region
    $region14: #{tpu_custom_call.1} parent=1 // pred_check
      _
    $region15: #{tpu_custom_call.1} parent=1 // pred_check_branch
      %21 = sbr.rel (0) target = $region17
    $region16: #{tpu_custom_call.1} parent=1 // pred_region
      _
    $region17: #{tpu_custom_call.1} parent=1 // pred_fallthru
      _
    // Predicated region
    $region18: #{tpu_custom_call.1} parent=1 // pred_check
      _
    $region19: #{tpu_custom_call.1} parent=1 // pred_check_branch
      %23 = sbr.rel (0) target = $region21
    $region20: #{tpu_custom_call.1} parent=1 // pred_region
      _
    $region21: #{tpu_custom_call.1} parent=1 // pred_fallthru
      _
    // Predicated region
    $region22: #{tpu_custom_call.1} parent=1 // pred_check
      _
    $region23: #{tpu_custom_call.1} parent=1 // pred_check_branch
      %25 = sbr.rel (0) target = $region25
    $region24: #{tpu_custom_call.1} parent=1 // pred_region
      _
    $region25: #{tpu_custom_call.1} parent=1 // pred_fallthru
      _
    %v26 = vld [vmem:[%s0] sm:$0x3]
    %v27 = vld [vmem:[%s1] sm:$0xff]
    %v28 = vld [vmem:[%s1 + $0x8] sm:$0xff]
    %v29 = vld [vmem:[%s1 + $0x10] sm:$0xff]
    %v30 = vld [vmem:[%s1 + $0x18] sm:$0xff]
    %v31 = vld [vmem:[%s1 + $0x20] sm:$0xff]
    %v32 = vld [vmem:[%s1 + $0x28] sm:$0xff]
    %v33 = vld [vmem:[%s1 + $0x30] sm:$0xff]
    %v34 = vld [vmem:[%s1 + $0x38] sm:$0xff]
    %v35 = vld [vmem:[%s3] sm:$0xff]
    %v36 = vld [vmem:[%s3 + $0x8] sm:$0xff]
    %v37 = vld [vmem:[%s3 + $0x10] sm:$0xff]
    %v38 = vld [vmem:[%s3 + $0x18] sm:$0xff]
    %v39 = vld [vmem:[%s4] sm:$0xff]
    %v40 = vld [vmem:[%s4 + $0x8] sm:$0xff]
    %v41 = vld [vmem:[%s4 + $0x10] sm:$0xff]
    %v42 = vld [vmem:[%s4 + $0x18] sm:$0xff]
    %v43 = vld [vmem:[%s5] sm:$0x1]
    %v44 = vld [vmem:[%s2] sm:$0xff]
    %v45 = vld [vmem:[%s2 + $0x8] sm:$0xff]
    %v46 = vld [vmem:[%s2 + $0x10] sm:$0xff]
    %v47 = vld [vmem:[%s2 + $0x18] sm:$0xff]
    %v48 = vadd.f32 %v44, %v27
    %v49 = vadd.f32 %v45, %v28
    %v50 = vadd.f32 %v46, %v29
    %v51 = vadd.f32 %v47, %v30
    %v52 = vadd.f32 %v44, %v31
    %v53 = vadd.f32 %v45, %v32
    %v54 = vadd.f32 %v46, %v33
    %v55 = vadd.f32 %v47, %v34
    %v58 = vunpack.c.l.s4 1966171168
    %v59 = vunpack.c.0.s8 %v58
    %v60 = vlaneseq
    %v61 = vshrl.u32 %v60, 7
    %v62 = vsub.s32 %v59, %v61
    %v63 = vrot.slane %v26, %v62
    %v64 = vcombine.high %v63, %v63
    %v66 = vunpack.c.l.s4 1966171168
    %v67 = vunpack.c.0.s8 %v66
    %v68 = vlaneseq
    %v69 = vshrl.u32 %v68, 7
    %v70 = vsub.s32 %v67, %v69
    %v71 = vrot.slane %v63, %v70
    %v73 = vunpack.c.l.s4 1966171168
    %v74 = vunpack.c.0.s8 %v73
    %v75 = vlaneseq
    %v76 = vshrl.u32 %v75, 7
    %v77 = vsub.s32 %v74, %v76
    %v78 = vrot.slane %v64, %v77
    %v79 = vlaneseq
    %v80 = vshrl.u32 %v79, 7
    %v81 = vsub.s32 0, %v80
    %v82 = vrot.slane %v71, %v81
    %v83 = vlaneseq
    %v84 = vshrl.u32 %v83, 7
    %v85 = vsub.s32 0, %v84
    %v86 = vrot.slane %v78, %v85
    %v89 = vmul.f32 %v48, %v82
    %v90 = vmul.f32 %v49, %v82
    %v91 = vmul.f32 %v50, %v82
    %v92 = vmul.f32 %v51, %v82
    %v93 = vmul.f32 %v52, %v86
    %v94 = vmul.f32 %v53, %v86
    %v95 = vmul.f32 %v54, %v86
    %v96 = vmul.f32 %v55, %v86
    %vm97 = vcmask 130048
    %v98 = vsel %vm97, %v89, 0.0
    %99 = vadd.xlane.f32.xlu0 %v98
    %v100 = vpop.xlane.xlu0 %99
    %v101 = vsel %vm97, %v90, 0.0
    %102 = vadd.xlane.f32.xlu0 %v101
    %v103 = vpop.xlane.xlu0 %102
    %v104 = vsel %vm97, %v91, 0.0
    %105 = vadd.xlane.f32.xlu0 %v104
    %v106 = vpop.xlane.xlu0 %105
    %v107 = vsel %vm97, %v92, 0.0
    %108 = vadd.xlane.f32.xlu0 %v107
    %v109 = vpop.xlane.xlu0 %108
    %v110 = vsel %vm97, %v93, 0.0
    %111 = vadd.xlane.f32.xlu0 %v110
    %v112 = vpop.xlane.xlu0 %111
    %v113 = vsel %vm97, %v94, 0.0
    %114 = vadd.xlane.f32.xlu0 %v113
    %v115 = vpop.xlane.xlu0 %114
    %v116 = vsel %vm97, %v95, 0.0
    %117 = vadd.xlane.f32.xlu0 %v116
    %v118 = vpop.xlane.xlu0 %117
    %v119 = vsel %vm97, %v96, 0.0
    %120 = vadd.xlane.f32.xlu0 %v119
    %v121 = vpop.xlane.xlu0 %120
    %v123 = vlaneseq
    %v124 = vshrl.u32 %v123, 7
    %v125 = vsub.s32 0, %v124
    %v126 = vrot.slane %v43, %v125
    %128 = vbcast.lane.b32.xlu0 %v126, 256
    %v129 = vpop.permute.xlu0 %128
    %s131 = sor.u32 256, 8
    %132 = vbcast.lane.b32.xlu0 %v126, %s131
    %v133 = vpop.permute.xlu0 %132
    %s135 = sor.u32 256, 16
    %136 = vbcast.lane.b32.xlu0 %v126, %s135
    %v137 = vpop.permute.xlu0 %136
    %s139 = sor.u32 256, 24
    %140 = vbcast.lane.b32.xlu0 %v126, %s139
    %v141 = vpop.permute.xlu0 %140
    %v146 = vadd.f32 %v100, %v129
    %v147 = vadd.f32 %v103, %v133
    %v148 = vadd.f32 %v106, %v137
    %v149 = vadd.f32 %v109, %v141
    %v150 = vadd.f32 %v112, %v129
    %v151 = vadd.f32 %v115, %v133
    %v152 = vadd.f32 %v118, %v137
    %v153 = vadd.f32 %v121, %v141
    %v154 = vtanh.pop %v146
    %v155 = vtanh.pop %v147
    %v156 = vtanh.pop %v148
    %v157 = vtanh.pop %v149
    %v158 = vtanh.pop %v150
    %v159 = vtanh.pop %v151
    %v160 = vtanh.pop %v152
    %v161 = vtanh.pop %v153
    %v162 = vmul.f32 %v35, %v27
    %v163 = vmul.f32 %v36, %v28
    %v164 = vmul.f32 %v37, %v29
    %v165 = vmul.f32 %v38, %v30
    %v166 = vmul.f32 %v35, %v31
    %v167 = vmul.f32 %v36, %v32
    %v168 = vmul.f32 %v37, %v33
    %v169 = vmul.f32 %v38, %v34
    %171 = vset.pattern.permute.xlu0 0
    %172 = vperm.xlu0 %171, %v154
    %v173 = vpop.permute.xlu0 %172
    %176 = vset.pattern.permute.xlu0 0
    %177 = vperm.xlu0 %176, %v155
    %v178 = vpop.permute.xlu0 %177
    %181 = vset.pattern.permute.xlu0 0
    %182 = vperm.xlu0 %181, %v156
    %v183 = vpop.permute.xlu0 %182
    %186 = vset.pattern.permute.xlu0 0
    %187 = vperm.xlu0 %186, %v157
    %v188 = vpop.permute.xlu0 %187
    %191 = vset.pattern.permute.xlu0 0
    %192 = vperm.xlu0 %191, %v158
    %v193 = vpop.permute.xlu0 %192
    %196 = vset.pattern.permute.xlu0 0
    %197 = vperm.xlu0 %196, %v159
    %v198 = vpop.permute.xlu0 %197
    %201 = vset.pattern.permute.xlu0 0
    %202 = vperm.xlu0 %201, %v160
    %v203 = vpop.permute.xlu0 %202
    %206 = vset.pattern.permute.xlu0 0
    %207 = vperm.xlu0 %206, %v161
    %v208 = vpop.permute.xlu0 %207
    %v210 = vmul.f32 %v173, %v82
    %v211 = vmul.f32 %v178, %v82
    %v212 = vmul.f32 %v183, %v82
    %v213 = vmul.f32 %v188, %v82
    %v214 = vmul.f32 %v193, %v86
    %v215 = vmul.f32 %v198, %v86
    %v216 = vmul.f32 %v203, %v86
    %v217 = vmul.f32 %v208, %v86
    %v218 = vmul.f32 %v39, %v210
    %v219 = vmul.f32 %v40, %v211
    %v220 = vmul.f32 %v41, %v212
    %v221 = vmul.f32 %v42, %v213
    %v222 = vmul.f32 %v39, %v214
    %v223 = vmul.f32 %v40, %v215
    %v224 = vmul.f32 %v41, %v216
    %v225 = vmul.f32 %v42, %v217
    %v226 = vadd.f32 %v162, %v218
    %v227 = vadd.f32 %v163, %v219
    %v228 = vadd.f32 %v164, %v220
    %v229 = vadd.f32 %v165, %v221
    %v230 = vadd.f32 %v166, %v222
    %v231 = vadd.f32 %v167, %v223
    %v232 = vadd.f32 %v168, %v224
    %v233 = vadd.f32 %v169, %v225
    %v234 = vlaneseq
    %v235 = vand.u32 %v234, 127
    %v236 = vlaneseq
    %v237 = vshrl.u32 %v236, 7
    %v238 = vsub.s32 %v235, %v237
    %v239 = vrot.slane %v173, %v238
    %v240 = vadd.s32 %v235, 4294967288
    %v241 = vlaneseq
    %v242 = vshrl.u32 %v241, 7
    %v243 = vsub.s32 %v240, %v242
    %v244 = vrot.slane %v178, %v243
    %vm245 = vcmask 130112
    %v246 = vsel %vm245, %v244, %v239
    %v247 = vadd.s32 %v235, 4294967280
    %v248 = vlaneseq
    %v249 = vshrl.u32 %v248, 7
    %v250 = vsub.s32 %v247, %v249
    %v251 = vrot.slane %v183, %v250
    %vm252 = vcmask 195712
    %v253 = vsel %vm252, %v251, %v246
    %v254 = vadd.s32 %v235, 4294967272
    %v255 = vlaneseq
    %v256 = vshrl.u32 %v255, 7
    %v257 = vsub.s32 %v254, %v256
    %v258 = vrot.slane %v188, %v257
    %vm259 = vcmask 261312
    %v260 = vsel %vm259, %v258, %v253
    %v261 = vlaneseq
    %v262 = vshrl.u32 %v261, 7
    %v263 = vsub.s32 %v235, %v262
    %v264 = vrot.slane %v193, %v263
    %v265 = vlaneseq
    %v266 = vshrl.u32 %v265, 7
    %v267 = vsub.s32 %v240, %v266
    %v268 = vrot.slane %v198, %v267
    %v269 = vsel %vm245, %v268, %v264
    %v270 = vlaneseq
    %v271 = vshrl.u32 %v270, 7
    %v272 = vsub.s32 %v247, %v271
    %v273 = vrot.slane %v203, %v272
    %v274 = vsel %vm252, %v273, %v269
    %v275 = vlaneseq
    %v276 = vshrl.u32 %v275, 7
    %v277 = vsub.s32 %v254, %v276
    %v278 = vrot.slane %v208, %v277
    %v279 = vsel %vm259, %v278, %v274
    %vm280 = vcmask 1041409
    %v281 = vsel %vm280, %v279, %v260
    %vm283 = vcmask 254976
    %284 = vst.msk [vmem:[#allocation2] sm:$0x3] %vm283, %v281
    %285 = vst.msk [vmem:[%s7] sm:$0xff] %vm97, %v226
    %286 = vst.msk [vmem:[%s7 + $0x8] sm:$0xff] %vm97, %v227
    %287 = vst.msk [vmem:[%s7 + $0x10] sm:$0xff] %vm97, %v228
    %288 = vst.msk [vmem:[%s7 + $0x18] sm:$0xff] %vm97, %v229
    %289 = vst.msk [vmem:[%s7 + $0x20] sm:$0xff] %vm97, %v230
    %290 = vst.msk [vmem:[%s7 + $0x28] sm:$0xff] %vm97, %v231
    %291 = vst.msk [vmem:[%s7 + $0x30] sm:$0xff] %vm97, %v232
    %292 = vst.msk [vmem:[%s7 + $0x38] sm:$0xff] %vm97, %v233
    // Predicated region
    $region26: #{tpu_custom_call.1} parent=1 // pred_check
      _
    $region27: #{tpu_custom_call.1} parent=1 // pred_check_branch
      %294 = sbr.rel (0) target = $region29
    $region28: #{tpu_custom_call.1} parent=1 // pred_region
      %s296 = ssub.s32 32, 32
      %297 = vsyncadd [#allocation3], %s296
      %s299 = sshll.u32 [#allocation2], 4
      %s300 = int_to_ptr.vmem [resolvable:$true] %s299
      %302 = dma.vmem_to_hbm [thread:$0]  %s300, 32, %s6, [#allocation3]
    $region29: #{tpu_custom_call.1} parent=1 // pred_fallthru
      _
    // Predicated region
    $region30: #{tpu_custom_call.1} parent=1 // pred_check
      _
    $region31: #{tpu_custom_call.1} parent=1 // pred_check_branch
      %304 = sbr.rel (0) target = $region33
    $region32: #{tpu_custom_call.1} parent=1 // pred_region
      _
    $region33: #{tpu_custom_call.1} parent=1 // pred_fallthru
      _
    // Predicated region
    $region34: #{tpu_custom_call.1} parent=1 // pred_check
      _
    $region35: #{tpu_custom_call.1} parent=1 // pred_check_branch
      %306 = sbr.rel (0) target = $region37
    $region36: #{tpu_custom_call.1} parent=1 // pred_region
      %307 = dma.done [#allocation3], 32
    $region37: #{tpu_custom_call.1} parent=1 // pred_fallthru
      _
    // Predicated region
    $region38: #{tpu_custom_call.1} parent=1 // pred_check
      _
    $region39: #{tpu_custom_call.1} parent=1 // pred_check_branch
      %309 = sbr.rel (0) target = $region41
    $region40: #{tpu_custom_call.1} parent=1 // pred_region
      _
    $region41: #{tpu_custom_call.1} parent=1 // pred_fallthru
      _
    %310 = vsyncpa [#allocation3], 1

</llo_original>
